<compile_context>
chip_gen: v6e
topology: v6e:2x2x1
jax: 0.10.0
libtpu: 0.0.40
codegen_flags: <defaults>
</compile_context>

<pallas_src>
import jax
import jax.numpy as jnp
import numpy as np
from jax.experimental import pallas as pl
from jax.experimental.pallas import tpu as pltpu


def _conv_bn_prelu_kernel(x_ref, t_ref, s_ref, b_ref, a_ref, o_ref):
    """Fused 3x3 'same' conv + folded BatchNorm affine + PReLU for one sample.

    x_ref: (H+2, Kp)        bf16  padded input rows; Kp = roundup((W+2)*Cin, 128), zero tail
    t_ref: (3, Kp, W*Cout)  bf16  block-Toeplitz conv weights, one slab per kh tap
    s_ref: (1, W*Cout)      f32   per-channel BN scale, tiled across W
    b_ref: (1, W*Cout)      f32   per-channel shift (conv bias + BN folded), tiled across W
    a_ref: (1,)             f32   PReLU alpha (SMEM scalar)
    o_ref: (H, W*Cout)      f32   output rows (lane-dense)
    """
    H = o_ref.shape[0]
    # One MXU matmul per kh tap; kw/Cin mixing is folded into t_ref[kh]. Slicing the
    # bf16 LHS ref keeps every result tile at (H, W*Cout) so accumulation is in place.
    acc = jnp.dot(x_ref[0:H, :], t_ref[0], preferred_element_type=jnp.float32)
    acc = acc + jnp.dot(x_ref[1:H + 1, :], t_ref[1], preferred_element_type=jnp.float32)
    acc = acc + jnp.dot(x_ref[2:H + 2, :], t_ref[2], preferred_element_type=jnp.float32)
    z = acc * s_ref[...] + b_ref[...]                  # folded conv-bias + BatchNorm affine (f32)
    alpha = a_ref[0]
    o_ref[...] = jnp.where(z >= 0, z, alpha * z)       # PReLU (num_parameters=1)


def _build_block_toeplitz(weight, W):
    """(Cout, Cin, 3, 3) OIHW conv weight -> (3, (W+2)*Cin, W*Cout) block-Toeplitz slabs.

    T[kh][(w+kw)*Cin + ci, w*Cout + co] == weight[co, ci, kh, kw]; zero elsewhere.
    """
    Cout, Cin, KH, KW = weight.shape
    Wp = W + 2
    w_t = jnp.transpose(weight, (2, 3, 1, 0))            # (KH, KW, Cin, Cout)
    p = jnp.arange(Wp * Cin)
    q = jnp.arange(W * Cout)
    pw, ci = p // Cin, p % Cin                            # (P,)
    wq, co = q // Cout, q % Cout                          # (Q,)
    kw = pw[:, None] - wq[None, :]                        # (P, Q)
    valid = (kw >= 0) & (kw < KW)
    kw_c = jnp.clip(kw, 0, KW - 1)
    vals = w_t[:, kw_c, ci[:, None], co[None, :]]         # (KH, P, Q)
    return jnp.where(valid[None, :, :], vals, 0.0)


def conv2d_block_forward(x_nchw, weight, bias, gamma, beta, running_mean,
                         running_var, alpha, eps=1e-5):
    """Forward of Conv2DBlock: Conv2d(3x3, padding='same') -> BatchNorm2d -> PReLU.

    x_nchw : (N, Cin, H, W) f32     weight: (Cout, Cin, 3, 3)     bias: (Cout,)
    gamma/beta/running_mean/running_var: (Cout,) BatchNorm parameters / running stats
    alpha  : scalar PReLU parameter
    returns: (N, Cout, H, W) f32
    """
    # TODO(synk): BatchNorm2d is evaluated with running statistics (eval mode) folded into
    # a per-channel affine; training-mode batch statistics would need an extra
    # cross-sample reduction pass and is not implemented here.
    N, Cin, H, W = x_nchw.shape
    Cout = weight.shape[0]
    Hp = H + 2
    WpC = (W + 2) * Cin
    WC = W * Cout
    Kp = ((WpC + 127) // 128) * 128                       # lane/MXU-aligned contraction dim

    # --- glue: NCHW -> padded NHWC rows, bf16 streaming layout, lane-padded to Kp ---
    x = jnp.transpose(x_nchw, (0, 2, 3, 1))                       # (N, H, W, Cin)
    xp = jnp.pad(x, ((0, 0), (1, 1), (1, 1), (0, 0)))             # (N, H+2, W+2, Cin)
    xp = xp.reshape(N, Hp, WpC)
    xp = jnp.pad(xp, ((0, 0), (0, 0), (0, Kp - WpC))).astype(jnp.bfloat16)

    # --- fold the conv weight into 3 block-Toeplitz slabs (bf16), K padded to Kp ---
    t_mat = _build_block_toeplitz(weight.astype(jnp.float32), W)  # (3, WpC, WC)
    t_mat = jnp.pad(t_mat, ((0, 0), (0, Kp - WpC), (0, 0))).astype(jnp.bfloat16)

    # --- fold conv bias + BatchNorm into per-channel scale/shift, tiled onto lanes ---
    inv_std = jax.lax.rsqrt(running_var.astype(jnp.float32) + eps)
    scale = gamma.astype(jnp.float32) * inv_std                                   # (Cout,)
    shift = beta.astype(jnp.float32) + (bias.astype(jnp.float32)
                                        - running_mean.astype(jnp.float32)) * scale
    s_row = jnp.tile(scale, W).reshape(1, WC)
    b_row = jnp.tile(shift, W).reshape(1, WC)
    a_vec = jnp.asarray(alpha, jnp.float32).reshape(1)

    flops = 2 * N * 3 * H * Kp * WC
    bytes_accessed = (xp.size * 2 + t_mat.size * 2
                      + (s_row.size + b_row.size + a_vec.size) * 4
                      + N * H * WC * 4)

    y = pl.pallas_call(
        _conv_bn_prelu_kernel,
        out_shape=jax.ShapeDtypeStruct((N, H, WC), jnp.float32),
        grid_spec=pltpu.PrefetchScalarGridSpec(
            num_scalar_prefetch=0,
            grid=(N,),
            in_specs=[
                pl.BlockSpec((None, Hp, Kp), lambda n: (n, 0, 0)),    # per-sample input rows
                pl.BlockSpec((3, Kp, WC), lambda n: (0, 0, 0)),       # weights (resident, no re-DMA)
                pl.BlockSpec((1, WC), lambda n: (0, 0)),              # BN scale row
                pl.BlockSpec((1, WC), lambda n: (0, 0)),              # bias/BN shift row
                pl.BlockSpec(memory_space=pltpu.MemorySpace.SMEM),    # PReLU alpha scalar
            ],
            out_specs=pl.BlockSpec((None, H, WC), lambda n: (n, 0, 0)),
        ),
        compiler_params=pltpu.CompilerParams(
            dimension_semantics=("parallel",),
            vmem_limit_bytes=32 * 1024 * 1024,
        ),
        cost_estimate=pl.CostEstimate(flops=flops, transcendentals=0,
                                      bytes_accessed=bytes_accessed),
    )(xp, t_mat, s_row, b_row, a_vec)

    # --- glue: (N, H, W*Cout) -> NCHW ---
    y = y.reshape(N, H, W, Cout)
    return jnp.transpose(y, (0, 3, 1, 2))


def _reference(x_nchw, weight, bias, gamma, beta, mean, var, alpha, eps=1e-5):
    """Pure-JAX reference: lax conv + eval-mode BatchNorm + PReLU.

    Input/weight are quantized to bf16 (and restored to f32) so the comparison isolates
    kernel correctness from the deliberate bf16-streaming bandwidth tradeoff.
    """
    xq = x_nchw.astype(jnp.bfloat16).astype(jnp.float32)
    wq = weight.astype(jnp.bfloat16).astype(jnp.float32)
    y = jax.lax.conv_general_dilated(
        xq, wq, window_strides=(1, 1), padding=((1, 1), (1, 1)),
        dimension_numbers=("NCHW", "OIHW", "NCHW"),
        precision=jax.lax.Precision.HIGHEST)
    y = y + bias.reshape(1, -1, 1, 1)
    y = ((y - mean.reshape(1, -1, 1, 1))
         * jax.lax.rsqrt(var.reshape(1, -1, 1, 1) + eps)
         * gamma.reshape(1, -1, 1, 1) + beta.reshape(1, -1, 1, 1))
    return jnp.where(y >= 0, y, alpha * y)


if __name__ == "__main__":
    # Small deterministic setup consistent with Conv2DBlock(in_channels=4, out_channels=8).
    N, Cin, H, W = 2, 4, 16, 16
    Cout = 8
    eps = 1e-5

    key = jax.random.PRNGKey(0)
    kx, kwt, kb, kg, kbe, km, kv = jax.random.split(key, 7)

    x = jax.random.normal(kx, (N, Cin, H, W), dtype=jnp.float32)

    # Conv2D init: xavier_normal_ weight.  The module defaults (bias=0, BN identity,
    # PReLU alpha=0) make the epilogue degenerate, so small non-trivial values are used
    # to actually exercise the fused bias/BatchNorm/PReLU path (the forward formula is
    # identical for any parameter values).
    fan_in, fan_out = Cin * 9, Cout * 9
    std = float(np.sqrt(2.0 / (fan_in + fan_out)))
    weight = jax.random.normal(kwt, (Cout, Cin, 3, 3), dtype=jnp.float32) * std
    bias = 0.1 * jax.random.normal(kb, (Cout,), dtype=jnp.float32)
    gamma = 1.0 + 0.1 * jax.random.normal(kg, (Cout,), dtype=jnp.float32)
    beta = 0.1 * jax.random.normal(kbe, (Cout,), dtype=jnp.float32)
    running_mean = 0.1 * jax.random.normal(km, (Cout,), dtype=jnp.float32)
    running_var = 0.5 + 0.5 * jnp.abs(jax.random.normal(kv, (Cout,), dtype=jnp.float32))
    alpha = jnp.float32(0.25)

    fwd = jax.jit(conv2d_block_forward)
    out = fwd(x, weight, bias, gamma, beta, running_mean, running_var, alpha)
    out = jax.block_until_ready(out)
    assert out.shape == (N, Cout, H, W)

    ref = _reference(x, weight, bias, gamma, beta, running_mean, running_var,
                     alpha, eps=eps)
    np.testing.assert_allclose(np.asarray(out), np.asarray(ref), rtol=1e-4, atol=1e-4)

    print("KERNEL_OK")
</pallas_src>

<mosaic_0001>
module attributes {stable_mosaic.version = 11 : i64} {
  func.func @_conv_bn_prelu_kernel(%arg0: i32, %arg1: memref<1x18x128xbf16, #tpu.memory_space<vmem>>, %arg2: memref<3x128x128xbf16, #tpu.memory_space<vmem>>, %arg3: memref<1x128xf32, #tpu.memory_space<vmem>>, %arg4: memref<1x128xf32, #tpu.memory_space<vmem>>, %arg5: memref<1xf32, #tpu.memory_space<smem>>, %arg6: memref<1x16x128xf32, #tpu.memory_space<vmem>>) attributes {dimension_semantics = [#tpu.dimension_semantics<parallel>], iteration_bounds = array<i64: 2>, scalar_prefetch = 0 : i64, scratch_operands = 0 : i64, tpu.core_type = #tpu.core_type<tc>, window_params = [{transform_indices = @transform_0, window_bounds = array<i64: 1, 18, 128>}, {pipeline_mode = #tpu.pipeline_mode<synchronous>, transform_indices = @transform_1, window_bounds = array<i64: 3, 128, 128>}, {pipeline_mode = #tpu.pipeline_mode<synchronous>, transform_indices = @transform_2, window_bounds = array<i64: 1, 128>}, {pipeline_mode = #tpu.pipeline_mode<synchronous>, transform_indices = @transform_3, window_bounds = array<i64: 1, 128>}, {transform_indices = @transform_4, window_bounds = array<i64: 1>}, {transform_indices = @transform_5, window_bounds = array<i64: 1, 16, 128>}]} {
    %c0 = arith.constant 0 : index
    %c0_0 = arith.constant 0 : index
    %c0_1 = arith.constant 0 : index
    %0 = vector.load %arg1[%c0, %c0_0, %c0_1] : memref<1x18x128xbf16, #tpu.memory_space<vmem>>, vector<1x16x128xbf16>
    %1 = vector.shape_cast %0 : vector<1x16x128xbf16> to vector<16x128xbf16>
    %c0_2 = arith.constant 0 : index
    %c0_3 = arith.constant 0 : index
    %c0_4 = arith.constant 0 : index
    %2 = vector.load %arg2[%c0_2, %c0_3, %c0_4] : memref<3x128x128xbf16, #tpu.memory_space<vmem>>, vector<1x128x128xbf16>
    %3 = vector.shape_cast %2 : vector<1x128x128xbf16> to vector<128x128xbf16>
    %cst = arith.constant dense<0.000000e+00> : vector<16x128xf32>
    %4 = tpu.matmul %1, %3, %cst {dimension_numbers = #tpu.dot_dimension_numbers<[1], [0], [0], [1], [0, 0, 1, 1], [], []>} : vector<16x128xbf16>, vector<128x128xbf16>, vector<16x128xf32> -> vector<16x128xf32>
    %c0_5 = arith.constant 0 : index
    %c1 = arith.constant 1 : index
    %c0_6 = arith.constant 0 : index
    %5 = vector.load %arg1[%c0_5, %c1, %c0_6] : memref<1x18x128xbf16, #tpu.memory_space<vmem>>, vector<1x16x128xbf16>
    %6 = vector.shape_cast %5 : vector<1x16x128xbf16> to vector<16x128xbf16>
    %c1_7 = arith.constant 1 : index
    %c0_8 = arith.constant 0 : index
    %c0_9 = arith.constant 0 : index
    %7 = vector.load %arg2[%c1_7, %c0_8, %c0_9] : memref<3x128x128xbf16, #tpu.memory_space<vmem>>, vector<1x128x128xbf16>
    %8 = vector.shape_cast %7 : vector<1x128x128xbf16> to vector<128x128xbf16>
    %cst_10 = arith.constant dense<0.000000e+00> : vector<16x128xf32>
    %9 = tpu.matmul %6, %8, %cst_10 {dimension_numbers = #tpu.dot_dimension_numbers<[1], [0], [0], [1], [0, 0, 1, 1], [], []>} : vector<16x128xbf16>, vector<128x128xbf16>, vector<16x128xf32> -> vector<16x128xf32>
    %10 = arith.addf %4, %9 : vector<16x128xf32>
    %c0_11 = arith.constant 0 : index
    %c2 = arith.constant 2 : index
    %c0_12 = arith.constant 0 : index
    %11 = vector.load %arg1[%c0_11, %c2, %c0_12] : memref<1x18x128xbf16, #tpu.memory_space<vmem>>, vector<1x16x128xbf16>
    %12 = vector.shape_cast %11 : vector<1x16x128xbf16> to vector<16x128xbf16>
    %c2_13 = arith.constant 2 : index
    %c0_14 = arith.constant 0 : index
    %c0_15 = arith.constant 0 : index
    %13 = vector.load %arg2[%c2_13, %c0_14, %c0_15] : memref<3x128x128xbf16, #tpu.memory_space<vmem>>, vector<1x128x128xbf16>
    %14 = vector.shape_cast %13 : vector<1x128x128xbf16> to vector<128x128xbf16>
    %cst_16 = arith.constant dense<0.000000e+00> : vector<16x128xf32>
    %15 = tpu.matmul %12, %14, %cst_16 {dimension_numbers = #tpu.dot_dimension_numbers<[1], [0], [0], [1], [0, 0, 1, 1], [], []>} : vector<16x128xbf16>, vector<128x128xbf16>, vector<16x128xf32> -> vector<16x128xf32>
    %16 = arith.addf %10, %15 : vector<16x128xf32>
    %c0_17 = arith.constant 0 : index
    %c0_18 = arith.constant 0 : index
    %17 = vector.load %arg3[%c0_17, %c0_18] : memref<1x128xf32, #tpu.memory_space<vmem>>, vector<1x128xf32>
    %18 = vector.broadcast %17 : vector<1x128xf32> to vector<16x128xf32>
    %19 = arith.mulf %16, %18 : vector<16x128xf32>
    %c0_19 = arith.constant 0 : index
    %c0_20 = arith.constant 0 : index
    %20 = vector.load %arg4[%c0_19, %c0_20] : memref<1x128xf32, #tpu.memory_space<vmem>>, vector<1x128xf32>
    %21 = vector.broadcast %20 : vector<1x128xf32> to vector<16x128xf32>
    %22 = arith.addf %19, %21 : vector<16x128xf32>
    %c0_21 = arith.constant 0 : index
    %23 = memref.load %arg5[%c0_21] : memref<1xf32, #tpu.memory_space<smem>>
    %cst_22 = arith.constant 0.000000e+00 : f32
    %24 = vector.broadcast %cst_22 : f32 to vector<16x128xf32>
    %25 = arith.cmpf oge, %22, %24 : vector<16x128xf32>
    %26 = vector.broadcast %23 : f32 to vector<16x128xf32>
    %27 = arith.mulf %26, %22 : vector<16x128xf32>
    %28 = arith.select %25, %22, %27 : vector<16x128xi1>, vector<16x128xf32>
    %c0_23 = arith.constant 0 : index
    %c0_24 = arith.constant 0 : index
    %c0_25 = arith.constant 0 : index
    %29 = vector.load %arg6[%c0_23, %c0_24, %c0_25] : memref<1x16x128xf32, #tpu.memory_space<vmem>>, vector<1x16x128xf32>
    %30 = vector.shape_cast %29 : vector<1x16x128xf32> to vector<16x128xf32>
    %31 = vector.shape_cast %28 : vector<16x128xf32> to vector<1x16x128xf32>
    tpu.vector_store %arg6[%c0_23, %c0_24, %c0_25], %31 {strides = array<i32>} : memref<1x16x128xf32, #tpu.memory_space<vmem>>, vector<1x16x128xf32>,
    return
  }
  func.func @transform_0(%arg0: i32) -> (i32, i32, i32) {
    %c0_i32 = arith.constant 0 : i32
    %c0_i32_0 = arith.constant 0 : i32
    %c0_i32_1 = arith.constant 0 : i32
    return %arg0, %c0_i32, %c0_i32_0 : i32, i32, i32
  }
  func.func @transform_1(%arg0: i32) -> (i32, i32, i32) {
    %c0_i32 = arith.constant 0 : i32
    %c0_i32_0 = arith.constant 0 : i32
    %c0_i32_1 = arith.constant 0 : i32
    %c0_i32_2 = arith.constant 0 : i32
    return %c0_i32, %c0_i32_0, %c0_i32_1 : i32, i32, i32
  }
  func.func @transform_2(%arg0: i32) -> (i32, i32) {
    %c0_i32 = arith.constant 0 : i32
    %c0_i32_0 = arith.constant 0 : i32
    %c0_i32_1 = arith.constant 0 : i32
    return %c0_i32, %c0_i32_0 : i32, i32
  }
  func.func @transform_3(%arg0: i32) -> (i32, i32) {
    %c0_i32 = arith.constant 0 : i32
    %c0_i32_0 = arith.constant 0 : i32
    %c0_i32_1 = arith.constant 0 : i32
    return %c0_i32, %c0_i32_0 : i32, i32
  }
  func.func @transform_4(%arg0: i32) -> i32 {
    %c0_i32 = arith.constant 0 : i32
    %c0_i32_0 = arith.constant 0 : i32
    return %c0_i32 : i32
  }
  func.func @transform_5(%arg0: i32) -> (i32, i32, i32) {
    %c0_i32 = arith.constant 0 : i32
    %c0_i32_0 = arith.constant 0 : i32
    %c0_i32_1 = arith.constant 0 : i32
    return %arg0, %c0_i32, %c0_i32_0 : i32, i32, i32
  }
}

</mosaic_0001>

<llo_original>
// kernel: tile.13
$region0: #{tile.13}
  #allocation0 [shape = 's32[1]{0}', space=sflag, size = 0x4, scoped, tag = 'scoped memory for tile.13']
  %s0 = inlined_call_operand.vmem [shape: f32[8], index: 0, kind: input, shape index: {}]
  %s1 = inlined_call_operand.vmem [shape: f32[16,8], index: 1, kind: output, shape index: {}]
  // Predicated region
  $region2: #{tile.13} parent=0 // pred_check
    _
  $region3: #{tile.13} parent=0 // pred_check_branch
    %3 = sbr.rel (0) target = $region5
  $region4: #{tile.13} parent=0 // pred_region
    _
  $region5: #{tile.13} parent=0 // pred_fallthru
    _
  %v4 = vld [vmem:[%s0] ss:$0 sm:$0xff]
  %5 = vst [vmem:[%s1] sm:$0xff] %v4
  %s6 = scalar_lea.vmem %s1, 8
  %7 = vst [vmem:[%s6] sm:$0xff] %v4

// kernel: tile.14
$region0: #{tile.14}
  %s0 = inlined_call_operand.vmem [shape: f32[16,8], index: 0, kind: input, shape index: {}]
  %s1 = inlined_call_operand.vmem [shape: f32[1,128], index: 1, kind: output, shape index: {}]
  $region1: #{tile.14} parent=0
    #allocation0 [shape = 'u8[4096]{0}', space=vmem, size = 0x1000, scoped, tag = 'scoped mem for output reshape']
    %v2 = vld [vmem:[%s0] sm:$0x1]
    %vm3 = vcmask 64512
    %4 = vst.msk [vmem:[#allocation0] sm:$0x1] %vm3, %v2
    %s5 = scalar_lea.vmem %s0, 15
    %v6 = vld [vmem:[%s5] sm:$0x1]
    %7 = vrot.lane.b32.xlu0 %v6, 120
    %v8 = vpop.permute.xlu0 %7
    %vm9 = vcmask 1048512
    %10 = vst.msk [vmem:[#allocation0] sm:$0x1] %vm9, %v8
    %s11 = scalar_lea.vmem %s0, 14
    %v12 = vld [vmem:[%s11] sm:$0x1]
    %13 = vrot.lane.b32.xlu0 %v12, 112
    %v14 = vpop.permute.xlu0 %13
    %vm15 = vcmask 982912
    %16 = vst.msk [vmem:[#allocation0] sm:$0x1] %vm15, %v14
    %s17 = scalar_lea.vmem %s0, 13
    %v18 = vld [vmem:[%s17] sm:$0x1]
    %19 = vrot.lane.b32.xlu0 %v18, 104
    %v20 = vpop.permute.xlu0 %19
    %vm21 = vcmask 917312
    %22 = vst.msk [vmem:[#allocation0] sm:$0x1] %vm21, %v20
    %s23 = scalar_lea.vmem %s0, 12
    %v24 = vld [vmem:[%s23] sm:$0x1]
    %25 = vrot.lane.b32.xlu0 %v24, 96
    %v26 = vpop.permute.xlu0 %25
    %vm27 = vcmask 851712
    %28 = vst.msk [vmem:[#allocation0] sm:$0x1] %vm27, %v26
    %s29 = scalar_lea.vmem %s0, 11
    %v30 = vld [vmem:[%s29] sm:$0x1]
    %31 = vrot.lane.b32.xlu0 %v30, 88
    %v32 = vpop.permute.xlu0 %31
    %vm33 = vcmask 786112
    %34 = vst.msk [vmem:[#allocation0] sm:$0x1] %vm33, %v32
    %s35 = scalar_lea.vmem %s0, 10
    %v36 = vld [vmem:[%s35] sm:$0x1]
    %37 = vrot.lane.b32.xlu0 %v36, 80
    %v38 = vpop.permute.xlu0 %37
    %vm39 = vcmask 720512
    %40 = vst.msk [vmem:[#allocation0] sm:$0x1] %vm39, %v38
    %s41 = scalar_lea.vmem %s0, 9
    %v42 = vld [vmem:[%s41] sm:$0x1]
    %43 = vrot.lane.b32.xlu0 %v42, 72
    %v44 = vpop.permute.xlu0 %43
    %vm45 = vcmask 654912
    %46 = vst.msk [vmem:[#allocation0] sm:$0x1] %vm45, %v44
    %s47 = scalar_lea.vmem %s0, 8
    %v48 = vld [vmem:[%s47] sm:$0x1]
    %49 = vrot.lane.b32.xlu0 %v48, 64
    %v50 = vpop.permute.xlu0 %49
    %vm51 = vcmask 589312
    %52 = vst.msk [vmem:[#allocation0] sm:$0x1] %vm51, %v50
    %s53 = scalar_lea.vmem %s0, 7
    %v54 = vld [vmem:[%s53] sm:$0x1]
    %55 = vrot.lane.b32.xlu0 %v54, 56
    %v56 = vpop.permute.xlu0 %55
    %vm57 = vcmask 523712
    %58 = vst.msk [vmem:[#allocation0] sm:$0x1] %vm57, %v56
    %s59 = scalar_lea.vmem %s0, 6
    %v60 = vld [vmem:[%s59] sm:$0x1]
    %61 = vrot.lane.b32.xlu0 %v60, 48
    %v62 = vpop.permute.xlu0 %61
    %vm63 = vcmask 458112
    %64 = vst.msk [vmem:[#allocation0] sm:$0x1] %vm63, %v62
    %s65 = scalar_lea.vmem %s0, 5
    %v66 = vld [vmem:[%s65] sm:$0x1]
    %67 = vrot.lane.b32.xlu0 %v66, 40
    %v68 = vpop.permute.xlu0 %67
    %vm69 = vcmask 392512
    %70 = vst.msk [vmem:[#allocation0] sm:$0x1] %vm69, %v68
    %s71 = scalar_lea.vmem %s0, 4
    %v72 = vld [vmem:[%s71] sm:$0x1]
    %73 = vrot.lane.b32.xlu0 %v72, 32
    %v74 = vpop.permute.xlu0 %73
    %vm75 = vcmask 326912
    %76 = vst.msk [vmem:[#allocation0] sm:$0x1] %vm75, %v74
    %s77 = scalar_lea.vmem %s0, 3
    %v78 = vld [vmem:[%s77] sm:$0x1]
    %79 = vrot.lane.b32.xlu0 %v78, 24
    %v80 = vpop.permute.xlu0 %79
    %vm81 = vcmask 261312
    %82 = vst.msk [vmem:[#allocation0] sm:$0x1] %vm81, %v80
    %s83 = scalar_lea.vmem %s0, 2
    %v84 = vld [vmem:[%s83] sm:$0x1]
    %85 = vrot.lane.b32.xlu0 %v84, 16
    %v86 = vpop.permute.xlu0 %85
    %vm87 = vcmask 195712
    %88 = vst.msk [vmem:[#allocation0] sm:$0x1] %vm87, %v86
    %s89 = scalar_lea.vmem %s0, 1
    %v90 = vld [vmem:[%s89] sm:$0x1]
    %91 = vrot.lane.b32.xlu0 %v90, 8
    %v92 = vpop.permute.xlu0 %91
    %vm93 = vcmask 130112
    %94 = vst.msk [vmem:[#allocation0] sm:$0x1] %vm93, %v92
    %s96 = sshll.u32 1, 1
    %s97 = ssub.s32 %s96, 1
    %v99 = vld [vmem:[#allocation0] sm:%s97]
    %s100 = sshll.u32 1, 1
    %s101 = ssub.s32 %s100, 1
    %102 = vst [vmem:[%s1] sm:%s101] %v99

// kernel: conv2d_block_forward.1
$region0: #{conv2d_block_forward.1}
  #allocation0 [shape = 'u32[]', space=smem, size = 0x4, offset = 0x4, fixed_abs, tag = 'smem constant byte address 0x4 - core index']
  #allocation1 [shape = 'u32[144,128]{1,0:T(1,128)}', space=vmem, size = 0x12000, scoped, tag = 'internal scratch']
  #allocation2 [shape = 'f32[1]{0:T(128)S(6)}', space=smem, size = 0x200, scoped, tag = 'scoped memory for conv2d_block_forward.1']
  %s0 = inlined_call_operand.vmem [shape: bf16[2,18,128], index: 0, kind: input, shape index: {}]
  %s1 = inlined_call_operand.vmem [shape: bf16[3,128,128], index: 1, kind: input, shape index: {}]
  %s2 = inlined_call_operand.vmem [shape: f32[1,128], index: 2, kind: input, shape index: {}]
  %s3 = inlined_call_operand.vmem [shape: f32[1,128], index: 3, kind: input, shape index: {}]
  %s4 = inlined_call_operand.<no memory space> [shape: f32[1], index: 4, kind: input, shape index: {}]
  %s5 = inlined_call_operand.vmem [shape: f32[2,16,128], index: 5, kind: output, shape index: {}]
  %s6 = sld [smem:[#allocation0]]
  $region53: #{conv2d_block_forward.1} parent=0
    _
  %s8 = ssub.s32 1, %s6
  %s9 = scalar_select 0, %s8, %s6
  %10 = sst [smem:[#allocation2]] %s4
  loop: start=0, step=1, limit=4
  $region2: #{conv2d_block_forward.1} parent=0 // loop_pre_header
    _
  $region3: #{conv2d_block_forward.1} parent=0 // loop_header
    %s12 = sphi 0, %s16
    %p13 = scmp.ge.s32.totalorder %s12, 4
    %s22 = sphi 0, %s24
    %s25 = sphi 0, %s22
    %s26 = sphi 0, %s25
    %s42 = sphi 0, %s26
    %s46 = sphi 0, %s46
    %s48 = sphi 0, %s46
    %s49 = sphi 0, %s48
    %s63 = sphi 0, %s49
    %s67 = sphi 0, %s67
    %s69 = sphi 0, %s67
    %s70 = sphi 0, %s69
    %s84 = sphi 0, %s70
    %s88 = sphi 0, %s88
    %s90 = sphi 0, %s88
    %s91 = sphi 0, %s90
    %s105 = sphi 0, %s91
    %s109 = sphi 0, %s109
    %s111 = sphi 0, %s109
    %s112 = sphi 0, %s111
    %s126 = sphi 0, %s112
    %s132 = sphi 0, %s134
    %s135 = sphi 0, %s132
    %s136 = sphi 0, %s135
    %s152 = sphi 0, %s136
  $region4: #{conv2d_block_forward.1} parent=0 // loop_header_branch
    %15 = sbr.rel (%p13) target = $region8
  $region5: #{conv2d_block_forward.1} parent=0 // loop_body
    %s17 = ssub.s32 %s12, 1
    %s18 = ssub.s32 %s12, 2
    %s19 = sadd.s32 %s12, 1
    %s20 = ssub.s32 %s12, %s19
    %p21 = scmp.eq.s32.totalorder %s20, 0
    %s23 = sadd.s32 %s22, 1
    %s24 = scalar_select %p21, %s22, %s23
    %p27 = pneg %p21
    %p28 = scmp.eq.s32.totalorder %s12, 1
    %p29 = por %p27, %p28
    %p30 = scmp.ne.s32.totalorder %s22, %s25
    %p31 = scmp.eq.s32.totalorder %s12, 0
    %p32 = por %p30, %p31
    %p33 = scmp.ne.s32.totalorder %s22, %s25
    %p34 = scmp.eq.s32.totalorder %s17, 1
    %p35 = por %p33, %p34
    %p36 = scmp.ne.s32.totalorder %s25, %s26
    %p37 = scmp.eq.s32.totalorder %s17, 0
    %p38 = por %p36, %p37
    %p39 = scmp.ne.s32.totalorder %s25, %s26
    %p40 = scmp.eq.s32.totalorder %s18, 1
    %p41 = por %p39, %p40
    %p43 = scmp.ne.s32.totalorder %s26, %s42
    %p44 = scmp.eq.s32.totalorder %s18, 0
    %p45 = por %p43, %p44
    %s47 = sadd.s32 %s46, 1
    %p50 = scmp.eq.s32.totalorder %s12, 1
    %p51 = scmp.ne.s32.totalorder %s46, %s48
    %p52 = scmp.eq.s32.totalorder %s12, 0
    %p53 = por %p51, %p52
    %p54 = scmp.ne.s32.totalorder %s46, %s48
    %p55 = scmp.eq.s32.totalorder %s17, 1
    %p56 = por %p54, %p55
    %p57 = scmp.ne.s32.totalorder %s48, %s49
    %p58 = scmp.eq.s32.totalorder %s17, 0
    %p59 = por %p57, %p58
    %p60 = scmp.ne.s32.totalorder %s48, %s49
    %p61 = scmp.eq.s32.totalorder %s18, 1
    %p62 = por %p60, %p61
    %p64 = scmp.ne.s32.totalorder %s49, %s63
    %p65 = scmp.eq.s32.totalorder %s18, 0
    %p66 = por %p64, %p65
    %s68 = sadd.s32 %s67, 1
    %p71 = scmp.eq.s32.totalorder %s12, 1
    %p72 = scmp.ne.s32.totalorder %s67, %s69
    %p73 = scmp.eq.s32.totalorder %s12, 0
    %p74 = por %p72, %p73
    %p75 = scmp.ne.s32.totalorder %s67, %s69
    %p76 = scmp.eq.s32.totalorder %s17, 1
    %p77 = por %p75, %p76
    %p78 = scmp.ne.s32.totalorder %s69, %s70
    %p79 = scmp.eq.s32.totalorder %s17, 0
    %p80 = por %p78, %p79
    %p81 = scmp.ne.s32.totalorder %s69, %s70
    %p82 = scmp.eq.s32.totalorder %s18, 1
    %p83 = por %p81, %p82
    %p85 = scmp.ne.s32.totalorder %s70, %s84
    %p86 = scmp.eq.s32.totalorder %s18, 0
    %p87 = por %p85, %p86
    %s89 = sadd.s32 %s88, 1
    %p92 = scmp.eq.s32.totalorder %s12, 1
    %p93 = scmp.ne.s32.totalorder %s88, %s90
    %p94 = scmp.eq.s32.totalorder %s12, 0
    %p95 = por %p93, %p94
    %p96 = scmp.ne.s32.totalorder %s88, %s90
    %p97 = scmp.eq.s32.totalorder %s17, 1
    %p98 = por %p96, %p97
    %p99 = scmp.ne.s32.totalorder %s90, %s91
    %p100 = scmp.eq.s32.totalorder %s17, 0
    %p101 = por %p99, %p100
    %p102 = scmp.ne.s32.totalorder %s90, %s91
    %p103 = scmp.eq.s32.totalorder %s18, 1
    %p104 = por %p102, %p103
    %p106 = scmp.ne.s32.totalorder %s91, %s105
    %p107 = scmp.eq.s32.totalorder %s18, 0
    %p108 = por %p106, %p107
    %s110 = sadd.s32 %s109, 1
    %p113 = scmp.eq.s32.totalorder %s12, 1
    %p114 = scmp.ne.s32.totalorder %s109, %s111
    %p115 = scmp.eq.s32.totalorder %s12, 0
    %p116 = por %p114, %p115
    %p117 = scmp.ne.s32.totalorder %s109, %s111
    %p118 = scmp.eq.s32.totalorder %s17, 1
    %p119 = por %p117, %p118
    %p120 = scmp.ne.s32.totalorder %s111, %s112
    %p121 = scmp.eq.s32.totalorder %s17, 0
    %p122 = por %p120, %p121
    %p123 = scmp.ne.s32.totalorder %s111, %s112
    %p124 = scmp.eq.s32.totalorder %s18, 1
    %p125 = por %p123, %p124
    %p127 = scmp.ne.s32.totalorder %s112, %s126
    %p128 = scmp.eq.s32.totalorder %s18, 0
    %p129 = por %p127, %p128
    %s130 = ssub.s32 %s12, %s19
    %p131 = scmp.eq.s32.totalorder %s130, 0
    %s133 = sadd.s32 %s132, 1
    %s134 = scalar_select %p131, %s132, %s133
    %p137 = pneg %p131
    %p138 = scmp.eq.s32.totalorder %s12, 1
    %p139 = por %p137, %p138
    %p140 = scmp.ne.s32.totalorder %s132, %s135
    %p141 = scmp.eq.s32.totalorder %s12, 0
    %p142 = por %p140, %p141
    %p143 = scmp.ne.s32.totalorder %s132, %s135
    %p144 = scmp.eq.s32.totalorder %s17, 1
    %p145 = por %p143, %p144
    %p146 = scmp.ne.s32.totalorder %s135, %s136
    %p147 = scmp.eq.s32.totalorder %s17, 0
    %p148 = por %p146, %p147
    %p149 = scmp.ne.s32.totalorder %s135, %s136
    %p150 = scmp.eq.s32.totalorder %s18, 1
    %p151 = por %p149, %p150
    %p153 = scmp.ne.s32.totalorder %s136, %s152
    %p154 = scmp.eq.s32.totalorder %s18, 0
    %p155 = por %p153, %p154
    %p156 = scmp.le.s32.totalorder 1, %s12
    %p157 = scmp.lt.s32.totalorder %s12, 3
    %p158 = pnand %p156, %p157
    %p159 = pneg %p158
    // Predicated region
    $region9: #{conv2d_block_forward.1} parent=5 // pred_check
      _
    $region10: #{conv2d_block_forward.1} parent=5 // pred_check_branch
      %161 = sbr.rel (%p158) target = $region12
    $region11: #{conv2d_block_forward.1} parent=5 // pred_region
      %s162 = ssub.s32 %s12, 1
      // Predicated region
      $region13: #{conv2d_block_forward.1} parent=11 // pred_check
        %p163 = pneg %p59
      $region14: #{conv2d_block_forward.1} parent=11 // pred_check_branch
        %165 = sbr.rel (%p163) target = $region16
      $region15: #{conv2d_block_forward.1} parent=11 // pred_region
        _
      $region16: #{conv2d_block_forward.1} parent=11 // pred_fallthru
        _
      // Predicated region
      $region17: #{conv2d_block_forward.1} parent=11 // pred_check
        %p166 = pneg %p80
      $region18: #{conv2d_block_forward.1} parent=11 // pred_check_branch
        %168 = sbr.rel (%p166) target = $region20
      $region19: #{conv2d_block_forward.1} parent=11 // pred_region
        _
      $region20: #{conv2d_block_forward.1} parent=11 // pred_fallthru
        _
      // Predicated region
      $region21: #{conv2d_block_forward.1} parent=11 // pred_check
        %p169 = pneg %p101
      $region22: #{conv2d_block_forward.1} parent=11 // pred_check_branch
        %171 = sbr.rel (%p169) target = $region24
      $region23: #{conv2d_block_forward.1} parent=11 // pred_region
        _
      $region24: #{conv2d_block_forward.1} parent=11 // pred_fallthru
        _
      // Predicated region
      $region25: #{conv2d_block_forward.1} parent=11 // pred_check
        %p172 = pneg %p122
      $region26: #{conv2d_block_forward.1} parent=11 // pred_check_branch
        %174 = sbr.rel (%p172) target = $region28
      $region27: #{conv2d_block_forward.1} parent=11 // pred_region
        _
      $region28: #{conv2d_block_forward.1} parent=11 // pred_fallthru
        _
    $region12: #{conv2d_block_forward.1} parent=5 // pred_fallthru
      _
    %p175 = scmp.lt.s32.totalorder %s12, 2
    // Predicated region
    $region29: #{conv2d_block_forward.1} parent=5 // pred_check
      %p176 = pneg %p175
    $region30: #{conv2d_block_forward.1} parent=5 // pred_check_branch
      %178 = sbr.rel (%p176) target = $region32
    $region31: #{conv2d_block_forward.1} parent=5 // pred_region
      // Predicated region
      $region33: #{conv2d_block_forward.1} parent=31 // pred_check
        %p179 = pneg %p32
      $region34: #{conv2d_block_forward.1} parent=31 // pred_check_branch
        %181 = sbr.rel (%p179) target = $region36
      $region35: #{conv2d_block_forward.1} parent=31 // pred_region
        %p182 = scmp.lt.s32.totalorder %s12, 1
        %s183 = scalar_select %p182, %s12, 1
        %s184 = smul.addr %s183, 3
        %s185 = smul.addr %s184, 4
        %s186 = scalar_lea.vmem %s0, %s185
      $region36: #{conv2d_block_forward.1} parent=31 // pred_fallthru
        _
    $region32: #{conv2d_block_forward.1} parent=5 // pred_fallthru
      _
    %p187 = scmp.le.s32.totalorder 1, %s12
    %p188 = scmp.lt.s32.totalorder %s12, 3
    %p189 = pnand %p187, %p188
    %p190 = pneg %p189
    // Predicated region
    $region37: #{conv2d_block_forward.1} parent=5 // pred_check
      _
    $region38: #{conv2d_block_forward.1} parent=5 // pred_check_branch
      %192 = sbr.rel (%p189) target = $region40
    $region39: #{conv2d_block_forward.1} parent=5 // pred_region
      %s193 = ssub.s32 %s12, 1
      %p194 = scmp.lt.s32.totalorder %s17, 1
      %s195 = scalar_select %p194, %s17, 1
      %s196 = smul.addr %s195, 3
      %s197 = smul.addr %s196, 4
      %s198 = scalar_lea.vmem %s0, %s197
      %p199 = pneg %p38
      %p200 = pneg %p35
      %p201 = pneg %p59
      %p202 = pneg %p56
      %p203 = pneg %p80
      %p204 = pneg %p77
      %p205 = pneg %p101
      %p206 = pneg %p98
      %p207 = pneg %p122
      %p208 = pneg %p119
      %p209 = pneg %p148
      %p210 = pneg %p145
      %p211 = scmp.lt.s32.totalorder %s17, 1
      %s212 = scalar_select %p211, %s17, 1
      %s213 = smul.addr %s212, 2
      %s214 = smul.addr %s213, 8
      %s215 = scalar_lea.vmem %s5, %s214
      %p216 = scmp.lt.s32.totalorder %s17, 1
      %s217 = scalar_select %p216, %s17, 1
      %s218 = smul.addr %s217, 3
      %s219 = smul.addr %s218, 4
      %s220 = scalar_lea.vmem %s0, %s219
      %p221 = scmp.lt.s32.totalorder %s17, 1
      %s222 = scalar_select %p221, %s17, 1
      %s223 = smul.addr %s222, 2
      %s224 = smul.addr %s223, 8
      %s225 = scalar_lea.vmem %s5, %s224
      %v227 = vld [vmem:[%s220] sm:$0xf]
      %v228 = vld [vmem:[%s220 + $0x4] sm:$0xf]
      %v229 = vld [vmem:[%s1] sm:$0xf]
      %v230 = vld [vmem:[%s1 + $0x4] sm:$0xf]
      %v231 = vld [vmem:[%s1 + $0x8] sm:$0xf]
      %v232 = vld [vmem:[%s1 + $0xc] sm:$0xf]
      %v233 = vld [vmem:[%s1 + $0x10] sm:$0xf]
      %v234 = vld [vmem:[%s1 + $0x14] sm:$0xf]
      %v235 = vld [vmem:[%s1 + $0x18] sm:$0xf]
      %v236 = vld [vmem:[%s1 + $0x1c] sm:$0xf]
      %v237 = vld [vmem:[%s1 + $0x20] sm:$0xf]
      %v238 = vld [vmem:[%s1 + $0x24] sm:$0xf]
      %v239 = vld [vmem:[%s1 + $0x28] sm:$0xf]
      %v240 = vld [vmem:[%s1 + $0x2c] sm:$0xf]
      %v241 = vld [vmem:[%s1 + $0x30] sm:$0xf]
      %v242 = vld [vmem:[%s1 + $0x34] sm:$0xf]
      %v243 = vld [vmem:[%s1 + $0x38] sm:$0xf]
      %v244 = vld [vmem:[%s1 + $0x3c] sm:$0xf]
      %v245 = vld [vmem:[%s220 + $0x8] sm:$0x1]
      %s246 = scalar_lea.vmem %s1, 64
      %v247 = vld [vmem:[%s246] sm:$0xf]
      %v248 = vld [vmem:[%s246 + $0x4] sm:$0xf]
      %v249 = vld [vmem:[%s246 + $0x8] sm:$0xf]
      %v250 = vld [vmem:[%s246 + $0xc] sm:$0xf]
      %v251 = vld [vmem:[%s246 + $0x10] sm:$0xf]
      %v252 = vld [vmem:[%s246 + $0x14] sm:$0xf]
      %v253 = vld [vmem:[%s246 + $0x18] sm:$0xf]
      %v254 = vld [vmem:[%s246 + $0x1c] sm:$0xf]
      %v255 = vld [vmem:[%s246 + $0x20] sm:$0xf]
      %v256 = vld [vmem:[%s246 + $0x24] sm:$0xf]
      %v257 = vld [vmem:[%s246 + $0x28] sm:$0xf]
      %v258 = vld [vmem:[%s246 + $0x2c] sm:$0xf]
      %v259 = vld [vmem:[%s246 + $0x30] sm:$0xf]
      %v260 = vld [vmem:[%s246 + $0x34] sm:$0xf]
      %v261 = vld [vmem:[%s246 + $0x38] sm:$0xf]
      %v262 = vld [vmem:[%s246 + $0x3c] sm:$0xf]
      %v266 = vunpack.c.l.b16 %v227
      %v267 = vunpack.c.l.b16 %v228
      %v268 = vunpack.c.l.b16 %v245
      %v269 = vpack.c.b16 %v267, %v266
      %v270 = vpack.c.b16 %v268, %v268
      %vm271 = vsmask.f32 7424
      %v273 = vshrl.u32 %v269, 16
      %v275 = vshll.u32 %v269, 16
      %v277 = vrot.slane %v275, 1
      %v278 = vor.u32 %v273, %v277
      %v280 = vshll.u32 %v270, 16
      %v282 = vrot.slane %v280, 1
      %v283 = vsel %vm271, %v278, %v282
      %v301 = vunpack.c.l.b16 %v247
      %v302 = vunpack.c.l.b16 %v248
      %v303 = vunpack.c.l.b16 %v249
      %v304 = vunpack.c.l.b16 %v250
      %v305 = vunpack.c.l.b16 %v251
      %v306 = vunpack.c.l.b16 %v252
      %v307 = vunpack.c.l.b16 %v253
      %v308 = vunpack.c.l.b16 %v254
      %v309 = vunpack.c.l.b16 %v255
      %v310 = vunpack.c.l.b16 %v256
      %v311 = vunpack.c.l.b16 %v257
      %v312 = vunpack.c.l.b16 %v258
      %v313 = vunpack.c.l.b16 %v259
      %v314 = vunpack.c.l.b16 %v260
      %v315 = vunpack.c.l.b16 %v261
      %v316 = vunpack.c.l.b16 %v262
      %v317 = vpack.c.b16 %v302, %v301
      %v318 = vpack.c.b16 %v304, %v303
      %v319 = vpack.c.b16 %v306, %v305
      %v320 = vpack.c.b16 %v308, %v307
      %v321 = vpack.c.b16 %v310, %v309
      %v322 = vpack.c.b16 %v312, %v311
      %v323 = vpack.c.b16 %v314, %v313
      %v324 = vpack.c.b16 %v316, %v315
      %333 = vmatprep.subr.bf16.mxu0 0
      %334 = vmatpush1.bf16.msra.mxu0 %v324
      %335 = vmatprep.subr.bf16.mxu0 0
      %336 = vmatpush1.bf16.msra.mxu0 %v323
      %337 = vmatprep.subr.bf16.mxu0 0
      %338 = vmatpush1.bf16.msra.mxu0 %v322
      %339 = vmatprep.subr.bf16.mxu0 0
      %340 = vmatpush1.bf16.msra.mxu0 %v321
      %341 = vmatprep.subr.bf16.mxu0 0
      %342 = vmatpush1.bf16.msra.mxu0 %v320
      %343 = vmatprep.subr.bf16.mxu0 0
      %344 = vmatpush1.bf16.msra.mxu0 %v319
      %345 = vmatprep.subr.bf16.mxu0 0
      %346 = vmatpush1.bf16.msra.mxu0 %v318
      %347 = vmatprep.subr.bf16.mxu0 0
      %348 = vmatpush1.bf16.msra.mxu0 %v317
      %349 = vmatprep.subr.bf16.mxu0 0
      %350 = vmatpush2.bf16.msra.mxu0 0
      %351 = vmatprep.subr.bf16.mxu0 0
      %352 = vmatpush2.bf16.msra.mxu0 0
      %353 = vmatprep.subr.bf16.mxu0 0
      %354 = vmatpush2.bf16.msra.mxu0 0
      %355 = vmatprep.subr.bf16.mxu0 0
      %356 = vmatpush2.bf16.msra.mxu0 0
      %357 = vmatprep.subr.bf16.mxu0 0
      %358 = vmatpush2.bf16.msra.mxu0 0
      %359 = vmatprep.subr.bf16.mxu0 0
      %360 = vmatpush2.bf16.msra.mxu0 0
      %361 = vmatprep.subr.bf16.mxu0 0
      %362 = vmatpush2.bf16.msra.mxu0 0
      %363 = vmatprep.subr.bf16.mxu0 0
      %364 = vmatpush2.bf16.msra.mxu0 0
      %365 = vmatprep.mubr.bf16.mxu0 0
      %366 = vmatmul.mubr.bf16.gmra.mxu0 %v283
      %v367 = vpop.f32.mrf.mxu0
      %v368 = vadd.f32 0.0, %v367
      %v369 = vpop.f32.mrf.mxu0
      %v370 = vpop.f32.mrf.mxu0
      %v371 = vadd.f32 0.0, %v370
      %v372 = vpop.f32.mrf.mxu0
      %373 = vdwg.mxu0
      %v391 = vunpack.c.l.b16 %v229
      %v392 = vunpack.c.l.b16 %v230
      %v393 = vunpack.c.l.b16 %v231
      %v394 = vunpack.c.l.b16 %v232
      %v395 = vunpack.c.l.b16 %v233
      %v396 = vunpack.c.l.b16 %v234
      %v397 = vunpack.c.l.b16 %v235
      %v398 = vunpack.c.l.b16 %v236
      %v399 = vunpack.c.l.b16 %v237
      %v400 = vunpack.c.l.b16 %v238
      %v401 = vunpack.c.l.b16 %v239
      %v402 = vunpack.c.l.b16 %v240
      %v403 = vunpack.c.l.b16 %v241
      %v404 = vunpack.c.l.b16 %v242
      %v405 = vunpack.c.l.b16 %v243
      %v406 = vunpack.c.l.b16 %v244
      %v407 = vpack.c.b16 %v392, %v391
      %v408 = vpack.c.b16 %v394, %v393
      %v409 = vpack.c.b16 %v396, %v395
      %v410 = vpack.c.b16 %v398, %v397
      %v411 = vpack.c.b16 %v400, %v399
      %v412 = vpack.c.b16 %v402, %v401
      %v413 = vpack.c.b16 %v404, %v403
      %v414 = vpack.c.b16 %v406, %v405
      %423 = vmatprep.subr.bf16.mxu0 0
      %424 = vmatpush1.bf16.msra.mxu0 %v414
      %425 = vmatprep.subr.bf16.mxu0 0
      %426 = vmatpush1.bf16.msra.mxu0 %v413
      %427 = vmatprep.subr.bf16.mxu0 0
      %428 = vmatpush1.bf16.msra.mxu0 %v412
      %429 = vmatprep.subr.bf16.mxu0 0
      %430 = vmatpush1.bf16.msra.mxu0 %v411
      %431 = vmatprep.subr.bf16.mxu0 0
      %432 = vmatpush1.bf16.msra.mxu0 %v410
      %433 = vmatprep.subr.bf16.mxu0 0
      %434 = vmatpush1.bf16.msra.mxu0 %v409
      %435 = vmatprep.subr.bf16.mxu0 0
      %436 = vmatpush1.bf16.msra.mxu0 %v408
      %437 = vmatprep.subr.bf16.mxu0 0
      %438 = vmatpush1.bf16.msra.mxu0 %v407
      %439 = vmatprep.subr.bf16.mxu0 0
      %440 = vmatpush2.bf16.msra.mxu0 0
      %441 = vmatprep.subr.bf16.mxu0 0
      %442 = vmatpush2.bf16.msra.mxu0 0
      %443 = vmatprep.subr.bf16.mxu0 0
      %444 = vmatpush2.bf16.msra.mxu0 0
      %445 = vmatprep.subr.bf16.mxu0 0
      %446 = vmatpush2.bf16.msra.mxu0 0
      %447 = vmatprep.subr.bf16.mxu0 0
      %448 = vmatpush2.bf16.msra.mxu0 0
      %449 = vmatprep.subr.bf16.mxu0 0
      %450 = vmatpush2.bf16.msra.mxu0 0
      %451 = vmatprep.subr.bf16.mxu0 0
      %452 = vmatpush2.bf16.msra.mxu0 0
      %453 = vmatprep.subr.bf16.mxu0 0
      %454 = vmatpush2.bf16.msra.mxu0 0
      %455 = vmatprep.mubr.bf16.mxu0 0
      %456 = vmatmul.mubr.bf16.gmra.mxu0 %v269
      %v457 = vpop.f32.mrf.mxu0
      %v458 = vadd.f32 %v368, %v457
      %v459 = vpop.f32.mrf.mxu0
      %v460 = vpop.f32.mrf.mxu0
      %v461 = vadd.f32 %v371, %v460
      %v462 = vpop.f32.mrf.mxu0
      %463 = vdwg.mxu0
      %v464 = vld [vmem:[%s220] sm:$0xe]
      %s465 = scalar_lea.vmem %s1, 128
      %v466 = vld [vmem:[%s465] sm:$0xf]
      %v467 = vld [vmem:[%s465 + $0x4] sm:$0xf]
      %v468 = vld [vmem:[%s465 + $0x8] sm:$0xf]
      %v469 = vld [vmem:[%s465 + $0xc] sm:$0xf]
      %v470 = vld [vmem:[%s465 + $0x10] sm:$0xf]
      %v471 = vld [vmem:[%s465 + $0x14] sm:$0xf]
      %v472 = vld [vmem:[%s465 + $0x18] sm:$0xf]
      %v473 = vld [vmem:[%s465 + $0x1c] sm:$0xf]
      %v474 = vld [vmem:[%s465 + $0x20] sm:$0xf]
      %v475 = vld [vmem:[%s465 + $0x24] sm:$0xf]
      %v476 = vld [vmem:[%s465 + $0x28] sm:$0xf]
      %v477 = vld [vmem:[%s465 + $0x2c] sm:$0xf]
      %v478 = vld [vmem:[%s465 + $0x30] sm:$0xf]
      %v479 = vld [vmem:[%s465 + $0x34] sm:$0xf]
      %v480 = vld [vmem:[%s465 + $0x38] sm:$0xf]
      %v481 = vld [vmem:[%s465 + $0x3c] sm:$0xf]
      %v483 = vunpack.c.l.b16 %v464
      %v484 = vpack.c.b16 %v267, %v483
      %vm485 = vcmask 1046528
      %v486 = vrot.slane %v484, 1
      %v487 = vrot.slane %v270, 1
      %v488 = vsel %vm485, %v486, %v487
      %v506 = vunpack.c.l.b16 %v466
      %v507 = vunpack.c.l.b16 %v467
      %v508 = vunpack.c.l.b16 %v468
      %v509 = vunpack.c.l.b16 %v469
      %v510 = vunpack.c.l.b16 %v470
      %v511 = vunpack.c.l.b16 %v471
      %v512 = vunpack.c.l.b16 %v472
      %v513 = vunpack.c.l.b16 %v473
      %v514 = vunpack.c.l.b16 %v474
      %v515 = vunpack.c.l.b16 %v475
      %v516 = vunpack.c.l.b16 %v476
      %v517 = vunpack.c.l.b16 %v477
      %v518 = vunpack.c.l.b16 %v478
      %v519 = vunpack.c.l.b16 %v479
      %v520 = vunpack.c.l.b16 %v480
      %v521 = vunpack.c.l.b16 %v481
      %v522 = vpack.c.b16 %v507, %v506
      %v523 = vpack.c.b16 %v509, %v508
      %v524 = vpack.c.b16 %v511, %v510
      %v525 = vpack.c.b16 %v513, %v512
      %v526 = vpack.c.b16 %v515, %v514
      %v527 = vpack.c.b16 %v517, %v516
      %v528 = vpack.c.b16 %v519, %v518
      %v529 = vpack.c.b16 %v521, %v520
      %538 = vmatprep.subr.bf16.mxu0 0
      %539 = vmatpush1.bf16.msra.mxu0 %v529
      %540 = vmatprep.subr.bf16.mxu0 0
      %541 = vmatpush1.bf16.msra.mxu0 %v528
      %542 = vmatprep.subr.bf16.mxu0 0
      %543 = vmatpush1.bf16.msra.mxu0 %v527
      %544 = vmatprep.subr.bf16.mxu0 0
      %545 = vmatpush1.bf16.msra.mxu0 %v526
      %546 = vmatprep.subr.bf16.mxu0 0
      %547 = vmatpush1.bf16.msra.mxu0 %v525
      %548 = vmatprep.subr.bf16.mxu0 0
      %549 = vmatpush1.bf16.msra.mxu0 %v524
      %550 = vmatprep.subr.bf16.mxu0 0
      %551 = vmatpush1.bf16.msra.mxu0 %v523
      %552 = vmatprep.subr.bf16.mxu0 0
      %553 = vmatpush1.bf16.msra.mxu0 %v522
      %554 = vmatprep.subr.bf16.mxu0 0
      %555 = vmatpush2.bf16.msra.mxu0 0
      %556 = vmatprep.subr.bf16.mxu0 0
      %557 = vmatpush2.bf16.msra.mxu0 0
      %558 = vmatprep.subr.bf16.mxu0 0
      %559 = vmatpush2.bf16.msra.mxu0 0
      %560 = vmatprep.subr.bf16.mxu0 0
      %561 = vmatpush2.bf16.msra.mxu0 0
      %562 = vmatprep.subr.bf16.mxu0 0
      %563 = vmatpush2.bf16.msra.mxu0 0
      %564 = vmatprep.subr.bf16.mxu0 0
      %565 = vmatpush2.bf16.msra.mxu0 0
      %566 = vmatprep.subr.bf16.mxu0 0
      %567 = vmatpush2.bf16.msra.mxu0 0
      %568 = vmatprep.subr.bf16.mxu0 0
      %569 = vmatpush2.bf16.msra.mxu0 0
      %570 = vmatprep.mubr.bf16.mxu0 0
      %571 = vmatmul.mubr.bf16.gmra.mxu0 %v488
      %v572 = vpop.f32.mrf.mxu0
      %v573 = vadd.f32 0.0, %v572
      %v574 = vpop.f32.mrf.mxu0
      %v575 = vpop.f32.mrf.mxu0
      %v576 = vadd.f32 0.0, %v575
      %v577 = vpop.f32.mrf.mxu0
      %578 = vdwg.mxu0
      %v579 = vadd.f32 %v458, %v573
      %v580 = vadd.f32 %v461, %v576
      %v581 = vld [vmem:[%s2] sm:$0x1]
      %v583 = vlaneseq
      %v584 = vshrl.u32 %v583, 7
      %v585 = vsub.s32 0, %v584
      %v586 = vrot.slane %v581, %v585
      %v588 = vmul.f32 %v579, %v586
      %v589 = vmul.f32 %v580, %v586
      %v590 = vld [vmem:[%s3] sm:$0x1]
      %v592 = vlaneseq
      %v593 = vshrl.u32 %v592, 7
      %v594 = vsub.s32 0, %v593
      %v595 = vrot.slane %v590, %v594
      %v597 = vadd.f32 %v588, %v595
      %v598 = vadd.f32 %v589, %v595
      %s599 = sld [smem:[#allocation2]]
      %vm600 = vcmp.ge.f32.partialorder %v597, 0.0
      %vm601 = vcmp.ge.f32.partialorder %v598, 0.0
      %v602 = vstv %s599
      %v603 = vmul.f32 %v602, %v597
      %v604 = vmul.f32 %v602, %v598
      %v605 = vsel %vm600, %v597, %v603
      %v606 = vsel %vm601, %v598, %v604
      %607 = vst [vmem:[%s225] sm:$0xff] %v605
      %608 = vst [vmem:[%s225 + $0x8] sm:$0xff] %v606
      %p609 = scmp.lt.s32.totalorder %s17, 1
      %s610 = scalar_select %p609, %s17, 1
      %s611 = smul.addr %s610, 2
      %s612 = smul.addr %s611, 8
      %s613 = scalar_lea.vmem %s5, %s612
      // Predicated region
      $region41: #{conv2d_block_forward.1} parent=39 // pred_check
        %p614 = pneg %p145
      $region42: #{conv2d_block_forward.1} parent=39 // pred_check_branch
        %616 = sbr.rel (%p614) target = $region44
      $region43: #{conv2d_block_forward.1} parent=39 // pred_region
        _
      $region44: #{conv2d_block_forward.1} parent=39 // pred_fallthru
        _
    $region40: #{conv2d_block_forward.1} parent=5 // pred_fallthru
      _
    %p617 = scmp.le.s32.totalorder 2, %s12
    // Predicated region
    $region45: #{conv2d_block_forward.1} parent=5 // pred_check
      %p618 = pneg %p617
    $region46: #{conv2d_block_forward.1} parent=5 // pred_check_branch
      %620 = sbr.rel (%p618) target = $region48
    $region47: #{conv2d_block_forward.1} parent=5 // pred_region
      %s621 = ssub.s32 %s12, 2
      // Predicated region
      $region49: #{conv2d_block_forward.1} parent=47 // pred_check
        %p622 = pneg %p151
      $region50: #{conv2d_block_forward.1} parent=47 // pred_check_branch
        %624 = sbr.rel (%p622) target = $region52
      $region51: #{conv2d_block_forward.1} parent=47 // pred_region
        %p625 = scmp.lt.s32.totalorder %s18, 1
        %s626 = scalar_select %p625, %s18, 1
        %s627 = smul.addr %s626, 2
        %s628 = smul.addr %s627, 8
        %s629 = scalar_lea.vmem %s5, %s628
      $region52: #{conv2d_block_forward.1} parent=47 // pred_fallthru
        _
    $region48: #{conv2d_block_forward.1} parent=5 // pred_fallthru
      _
  $region6: #{conv2d_block_forward.1} parent=0 // loop_footer
    %s16 = sadd.s32 1, %s12
  $region7: #{conv2d_block_forward.1} parent=0 // loop_footer_branch
    %11 = sbr.rel target = $region3
  $region8: #{conv2d_block_forward.1} parent=0 // loop_exit
    _

</llo_original>
